<compile_context>
chip_gen: v5e
topology: v5e:2x2
jax: 0.10.0
libtpu: 0.0.40
codegen_flags: <defaults>
</compile_context>

<pallas_src>
import functools

import jax
import jax.numpy as jnp
from jax import lax
from jax.experimental import pallas as pl
from jax.experimental.pallas import tpu as pltpu

SCALE = 20.0       # module default
_EPS_SQ = 1e-24    # torch F.normalize clamps the norm at 1e-12 -> norm^2 at 1e-24


def _mm_nt(a, b, use_bf16):
    """a @ b.T on the MXU (NT matmul, f32 accumulation)."""
    if use_bf16:
        a = a.astype(jnp.bfloat16)
        b = b.astype(jnp.bfloat16)
    return lax.dot_general(
        a, b, (((1,), (1,)), ((), ())), preferred_element_type=jnp.float32
    )


# ---------------------------------------------------------------------------
# Prologue: row-normalize (and optionally pre-fold the scale)
# ---------------------------------------------------------------------------
def _normalize_kernel(x_ref, out_ref, *, scale):
    x = x_ref[...].astype(jnp.float32)
    inv = lax.rsqrt(jnp.maximum(jnp.sum(x * x, axis=1, keepdims=True), _EPS_SQ))
    out_ref[...] = x * inv * scale


# ---------------------------------------------------------------------------
# Pass 1: tiled, diagonal-free row sums of exp(scale * cos_sim(d, d))
# ---------------------------------------------------------------------------
def _dd_rowsum_kernel(dn_ref, out_ref, *, scale, use_bf16):
    tm = out_ref.shape[0]          # rows handled by this grid step
    m = dn_ref.shape[0]            # total doc rows (resident, already normalized)
    i = pl.program_id(0)
    start = pl.multiple_of(i * tm, tm)

    dn = dn_ref[...]                                         # (M, D) normalized
    # Block rows are a slice of the already-normalized slab; fold scale here.
    dnb_s = dn_ref[pl.ds(start, tm), :] * scale              # (Tm, D)

    s = _mm_nt(dnb_s, dn, use_bf16)                          # (Tm, M) scale*cos
    # Mask the global diagonal BEFORE the exp: exp(-inf) == 0 exactly, and no
    # second (Tm, M) temporary / post-exp select pass is needed.
    row_g = start + lax.broadcasted_iota(jnp.int32, (tm, m), 0)
    col_g = lax.broadcasted_iota(jnp.int32, (tm, m), 1)
    s = jnp.where(row_g == col_g, -jnp.inf, s)
    out_ref[...] = jnp.sum(jnp.exp(s), axis=1, keepdims=True)  # (Tm, 1)


# ---------------------------------------------------------------------------
# Pass 2: q-side terms tiled along M with accumulators + final scalar loss
# ---------------------------------------------------------------------------
def _loss_kernel(qns_ref, dnk_ref, ddrs_ref, loss_ref,
                 acc_qidj, acc_djdi, acc_qjdi, lognum_s, *, scale, use_bf16):
    b = qns_ref.shape[0]           # query batch
    tk = dnk_ref.shape[0]          # doc rows in this column block (multiple of b)
    k = pl.program_id(0)
    nk = pl.num_programs(0)

    @pl.when(k == 0)
    def _():
        acc_qidj[...] = jnp.zeros_like(acc_qidj)
        acc_djdi[...] = jnp.zeros_like(acc_djdi)
        acc_qjdi[...] = jnp.zeros_like(acc_qjdi)
        # log(numerator_i) = scale * cos(q_i, d_i); doc rows 0..B-1 live in block 0.
        lognum_s[...] = jnp.sum(qns_ref[...] * dnk_ref[0:b, :],
                                axis=1, keepdims=True)        # (B, 1)

    # exp(scale * cos(q, d_block)); scale is already folded into qns.
    qd = jnp.exp(_mm_nt(qns_ref[...], dnk_ref[...], use_bf16))     # (B, Tk)
    acc_qidj[...] += jnp.sum(qd, axis=1, keepdims=True)            # qd.sum(-1) partial
    colsum = jnp.sum(qd, axis=0, keepdims=True)                    # (1, Tk)
    ddrs = ddrs_ref[...]                                           # (Tk, 1)
    # Grouped reductions (reshape(R, B).sum(0)): static width-B slices.
    for g in range(tk // b):
        acc_qjdi[...] += colsum[:, g * b:(g + 1) * b]              # (1, B)
        acc_djdi[...] += ddrs[g * b:(g + 1) * b, :]                # (B, 1)

    @pl.when(k == nk - 1)
    def _():
        qns = qns_ref[...]
        row_b = lax.broadcasted_iota(jnp.int32, (b, b), 0)
        col_b = lax.broadcasted_iota(jnp.int32, (b, b), 1)
        eye = row_b == col_b
        # qq off-diagonal row sums; qns carries scale on both sides -> divide once.
        sq = _mm_nt(qns, qns, use_bf16) * (1.0 / scale)            # (B, B) scale*cos
        qq_off = jnp.sum(jnp.exp(jnp.where(eye, -jnp.inf, sq)),
                         axis=1, keepdims=True)                    # (B, 1)
        # Orientation flip (1,B) -> (B,1) via diagonal select (VPU/XLU only,
        # no MXU identity matmul).
        qjdi_col = jnp.sum(jnp.where(eye, acc_qjdi[...], 0.0),
                           axis=1, keepdims=True)                  # (B, 1)
        denom = acc_qidj[...] + qjdi_col + qq_off + acc_djdi[...]  # (B, 1)
        loss_terms = (-1.0 / b) * (lognum_s[...] - jnp.log(denom))
        loss_ref[...] = jnp.sum(loss_terms, keepdims=True)         # (1, 1)


# ---------------------------------------------------------------------------
# Wrapper: generation-aware sizing helpers
# ---------------------------------------------------------------------------
def _vmem_capacity_bytes():
    try:
        return int(pltpu.get_tpu_info().vmem_capacity_bytes)
    except Exception:
        return 64 << 20  # conservative fallback: v7x per-TensorCore capacity


def _clamp_vmem(need_bytes, cap_bytes):
    lo = 16 << 20
    hi = max(lo, int(cap_bytes * 0.9))
    return int(min(max(int(need_bytes * 1.4) + (2 << 20), lo), hi))


def _pick_p1_rows(m, d, budget):
    """Pass-1 row tile: multiple of 8 dividing M, preferring >= 2 blocks."""
    if m % 8 != 0 or m <= 8:
        return m
    cands = [t for t in range(8, min(m, 2048) + 1, 8) if m % t == 0]
    if not cands:
        return m

    def need(tm):
        return 4 * (m * d + tm * d + 3 * tm * m + 4 * tm)

    two_plus = [t for t in cands if t <= m // 2 and need(t) <= budget]
    if two_plus:
        return max(two_plus)          # >= 2 blocks: both v7x TensorCores busy
    fits = [t for t in cands if need(t) <= budget]
    if fits:
        return max(fits)
    return min(cands)                 # best effort (resident dn dominates anyway)


def _pick_p2_cols(m, b, d, budget):
    """Pass-2 column tile: multiple of B dividing M (keeps grouping static)."""
    if b % 8 != 0:
        return m
    cands = [g * b for g in range(1, m // b + 1)
             if m % (g * b) == 0 and g * b <= max(b, 2048)]
    if not cands:
        return m

    def need(tk):
        return 4 * (b * d + 2 * tk * d + b * tk + 4 * tk + 2 * b * b + 8 * b)

    fits = [t for t in cands if need(t) <= budget]
    return max(fits) if fits else min(cands)


def _pick_norm_rows(m, d, budget):
    if m % 8 != 0:
        return m
    cands = [t for t in range(8, min(m, 1024) + 1, 8) if m % t == 0]
    if not cands:
        return m
    fits = [t for t in cands if 16 * t * d <= budget]
    return max(fits) if fits else min(cands)


def _resident_spec(shape, single_buffer):
    """Full-array block whose index never changes. Single-buffer it when
    supported: double-buffering an invariant slab just duplicates it in VMEM."""
    index_map = lambda *args: (0,) * len(shape)
    if single_buffer:
        return pl.BlockSpec(shape, index_map, pipeline_mode=pl.Buffered(1))
    return pl.BlockSpec(shape, index_map)


# ---------------------------------------------------------------------------
# Wrapper
# ---------------------------------------------------------------------------
def mnrl2_loss(embeddings_q, embeddings_d, *, scale=SCALE, use_bf16_matmul=False):
    b, dim = embeddings_q.shape
    m, dim2 = embeddings_d.shape
    assert dim == dim2, "hidden dims must match"
    assert m % b == 0, "doc count must be a multiple of the query batch size"

    cap = _vmem_capacity_bytes()
    budget = int(cap * 0.40)

    # ---- Prologue: normalize docs once (unscaled) and queries once (scaled).
    tr = _pick_norm_rows(m, dim, budget)
    dn = pl.pallas_call(
        functools.partial(_normalize_kernel, scale=1.0),
        out_shape=jax.ShapeDtypeStruct((m, dim), jnp.float32),
        grid=(m // tr,),
        in_specs=[pl.BlockSpec((tr, dim), lambda i: (i, 0))],
        out_specs=pl.BlockSpec((tr, dim), lambda i: (i, 0)),
        compiler_params=pltpu.CompilerParams(
            dimension_semantics=("parallel",),
            vmem_limit_bytes=_clamp_vmem(16 * tr * dim, cap)),
    )(embeddings_d)

    qns = pl.pallas_call(
        functools.partial(_normalize_kernel, scale=scale),
        out_shape=jax.ShapeDtypeStruct((b, dim), jnp.float32),
        grid=(1,),
        in_specs=[pl.BlockSpec((b, dim), lambda i: (0, 0))],
        out_specs=pl.BlockSpec((b, dim), lambda i: (0, 0)),
        compiler_params=pltpu.CompilerParams(
            dimension_semantics=("arbitrary",),
            vmem_limit_bytes=_clamp_vmem(16 * b * dim, cap)),
    )(embeddings_q)

    # ---- Pass 1: doc-doc off-diagonal row sums, parallel across TensorCores.
    tm = _pick_p1_rows(m, dim, budget)
    n_blocks = m // tm

    def run_pass1(single_buffer):
        slab = (1 if single_buffer else 2) * m * dim
        need = 4 * (slab + tm * dim + 3 * tm * m + 4 * tm)
        return pl.pallas_call(
            functools.partial(_dd_rowsum_kernel, scale=scale,
                              use_bf16=use_bf16_matmul),
            out_shape=jax.ShapeDtypeStruct((m, 1), jnp.float32),
            grid=(n_blocks,),
            in_specs=[_resident_spec((m, dim), single_buffer)],
            out_specs=pl.BlockSpec((tm, 1), lambda i: (i, 0)),
            compiler_params=pltpu.CompilerParams(
                dimension_semantics=("parallel",),
                vmem_limit_bytes=_clamp_vmem(need, cap)),
            cost_estimate=pl.CostEstimate(
                flops=int(2 * m * m * dim), transcendentals=int(m * m),
                bytes_accessed=int(4 * (m * dim + m))),
        )(dn)

    try:
        dd_rowsum = run_pass1(True)
    except Exception:  # pl.Buffered(1) unsupported on this jax: default buffering
        dd_rowsum = run_pass1(False)

    # ---- Pass 2: q-side terms tiled along M + final scalar loss.
    tk = _pick_p2_cols(m, b, dim, budget)
    n_steps = m // tk

    def run_pass2(single_buffer):
        slab_q = (1 if single_buffer else 2) * b * dim
        need = 4 * (slab_q + 2 * tk * dim + b * tk + 4 * tk + 2 * b * b + 8 * b)
        return pl.pallas_call(
            functools.partial(_loss_kernel, scale=scale,
                              use_bf16=use_bf16_matmul),
            out_shape=jax.ShapeDtypeStruct((1, 1), jnp.float32),
            grid=(n_steps,),
            in_specs=[
                _resident_spec((b, dim), single_buffer),
                pl.BlockSpec((tk, dim), lambda k: (k, 0)),
                pl.BlockSpec((tk, 1), lambda k: (k, 0)),
            ],
            out_specs=pl.BlockSpec((1, 1), lambda k: (0, 0)),
            scratch_shapes=[
                pltpu.VMEM((b, 1), jnp.float32),   # den_qidj accumulator
                pltpu.VMEM((b, 1), jnp.float32),   # den_djdi accumulator
                pltpu.VMEM((1, b), jnp.float32),   # den_qjdi accumulator (grouped)
                pltpu.VMEM((b, 1), jnp.float32),   # log numerator
            ],
            compiler_params=pltpu.CompilerParams(
                dimension_semantics=("arbitrary",),
                vmem_limit_bytes=_clamp_vmem(need, cap)),
            cost_estimate=pl.CostEstimate(
                flops=int(2 * b * m * dim + 2 * b * b * dim),
                transcendentals=int(b * m + b * b),
                bytes_accessed=int(4 * (m * dim + b * dim + m + 1))),
        )(qns, dn, dd_rowsum)

    try:
        out = run_pass2(True)
    except Exception:
        out = run_pass2(False)

    return out[0, 0]


# ---------------------------------------------------------------------------
# Pure-JAX mirror of the PyTorch forward (correctness check)
# ---------------------------------------------------------------------------
def _ref_loss(q, d, scale=SCALE):
    def cos_sim(a, b):
        an = a / jnp.maximum(jnp.linalg.norm(a, axis=1, keepdims=True), 1e-12)
        bn = b / jnp.maximum(jnp.linalg.norm(b, axis=1, keepdims=True), 1e-12)
        return an @ bn.T

    qd = jnp.exp(cos_sim(q, d) * scale)
    qq = jnp.exp(cos_sim(q, q) * scale)
    dd = jnp.exp(cos_sim(d, d) * scale)
    B = q.shape[0]
    mask_qq = jnp.eye(qd.shape[0], dtype=jnp.float32)
    mask_dd = jnp.eye(qd.shape[1], dtype=jnp.float32)
    extra = jnp.zeros((B, qd.shape[1] - qd.shape[0]), dtype=jnp.float32)
    mask_num = jnp.concatenate([mask_qq, extra], axis=1)
    num = (qd * mask_num).sum(-1)
    d_qidj = qd.sum(-1)
    d_qjdi = qd.sum(0).reshape(-1, B).sum(0)
    d_qiqj = (qq * (1.0 - mask_qq)).sum(-1)
    d_djdi = (dd * (1.0 - mask_dd)).sum(-1).reshape(-1, B).sum(0)
    return (-(1.0 / B) * jnp.log(num / (d_qidj + d_qjdi + d_qiqj + d_djdi))).sum()


if __name__ == "__main__":
    # B, M multiples of 8 (f32 sublanes), D multiple of 128 (lanes).
    B, R, D = 8, 2, 128
    key = jax.random.PRNGKey(0)
    kq, kp, kn = jax.random.split(key, 3)
    # stand-ins for model(sentence_feature)['sentence_embedding'] per feature group
    emb_q = jax.random.normal(kq, (B, D), dtype=jnp.float32)
    emb_pos = jax.random.normal(kp, (B, D), dtype=jnp.float32)
    emb_neg = jax.random.normal(kn, (B, D), dtype=jnp.float32)
    emb_d = jnp.concatenate([emb_pos, emb_neg], axis=0)   # (M, D), M = R*B

    loss = jax.block_until_ready(mnrl2_loss(emb_q, emb_d))
    ref = jax.block_until_ready(_ref_loss(emb_q, emb_d))

    assert jnp.isfinite(loss), "non-finite loss from kernel"
    assert jnp.allclose(loss, ref, rtol=1e-4, atol=1e-4), (loss, ref)
    print("KERNEL_OK")
</pallas_src>

<mosaic_0001>
module attributes {stable_mosaic.version = 11 : i64} {
  func.func @_normalize_kernel(%arg0: i32, %arg1: memref<16x128xf32, #tpu.memory_space<vmem>>, %arg2: memref<16x128xf32, #tpu.memory_space<vmem>>) attributes {dimension_semantics = [#tpu.dimension_semantics<parallel>], iteration_bounds = array<i64: 1>, scalar_prefetch = 0 : i64, scratch_operands = 0 : i64, tpu.core_type = #tpu.core_type<tc>, window_params = [{transform_indices = @transform_0, window_bounds = array<i64: 16, 128>}, {transform_indices = @transform_1, window_bounds = array<i64: 16, 128>}]} {
    %c0 = arith.constant 0 : index
    %c0_0 = arith.constant 0 : index
    %0 = vector.load %arg1[%c0, %c0_0] : memref<16x128xf32, #tpu.memory_space<vmem>>, vector<16x128xf32>
    %1 = arith.mulf %0, %0 : vector<16x128xf32>
    %cst = arith.constant dense<0.000000e+00> : vector<16xf32>
    %2 = vector.multi_reduction <add>, %1, %cst [1] : vector<16x128xf32> to vector<16xf32>
    %3 = vector.shape_cast %2 : vector<16xf32> to vector<16x1xf32>
    %cst_1 = arith.constant 1.000000e-24 : f32
    %4 = vector.broadcast %cst_1 : f32 to vector<16x1xf32>
    %5 = arith.maximumf %3, %4 : vector<16x1xf32>
    %6 = math.rsqrt %5 : vector<16x1xf32>
    %7 = vector.broadcast %6 : vector<16x1xf32> to vector<16x128xf32>
    %8 = arith.mulf %0, %7 : vector<16x128xf32>
    %cst_2 = arith.constant 1.000000e+00 : f32
    %9 = vector.broadcast %cst_2 : f32 to vector<16x128xf32>
    %10 = arith.mulf %8, %9 : vector<16x128xf32>
    %c0_3 = arith.constant 0 : index
    %c0_4 = arith.constant 0 : index
    %11 = vector.load %arg2[%c0_3, %c0_4] : memref<16x128xf32, #tpu.memory_space<vmem>>, vector<16x128xf32>
    tpu.vector_store %arg2[%c0_3, %c0_4], %10 {strides = array<i32>} : memref<16x128xf32, #tpu.memory_space<vmem>>, vector<16x128xf32>,
    return
  }
  func.func @transform_0(%arg0: i32) -> (i32, i32) {
    %c0_i32 = arith.constant 0 : i32
    %c0_i32_0 = arith.constant 0 : i32
    return %arg0, %c0_i32 : i32, i32
  }
  func.func @transform_1(%arg0: i32) -> (i32, i32) {
    %c0_i32 = arith.constant 0 : i32
    %c0_i32_0 = arith.constant 0 : i32
    return %arg0, %c0_i32 : i32, i32
  }
}

</mosaic_0001>

<llo_original>
// kernel: tpu_custom_call.1
$region0: #{tpu_custom_call.1}
  #allocation0 [shape = 'u32[]', space=smem, size = 0x4, offset = 0x4, fixed_abs, tag = 'smem constant byte address 0x4 - core index']
  #allocation1 [shape = 'u32[72,128]{1,0:T(1,128)}', space=vmem, size = 0x9000, scoped, tag = 'internal scratch']
  %s0 = inlined_call_operand.hbm [shape: f32[16,128], index: 0, kind: input, shape index: {}]
  %s1 = inlined_call_operand.hbm [shape: f32[16,128], index: 1, kind: output, shape index: {}]
  %s2 = sld [smem:[#allocation0]]
  $region18: #{tpu_custom_call.1} parent=0
    _
  %s4 = ssub.s32 1, %s2
  %s5 = scalar_select 0, %s4, %s2
  $region1: #{tpu_custom_call.1} parent=0
    #allocation2 [shape = 'u8[8192]{0}', space=vmem, size = 0x2000, scoped, tag = 'input window, operand 0, single buffered']
    #allocation3 [shape = 's32[1]{0}', space=sflag, size = 0x4, scoped, tag = 'scoped memory for tpu_custom_call.1']
    #allocation4 [shape = 's32[1]{0}', space=sflag, size = 0x4, scoped, tag = 'scoped memory for tpu_custom_call.1']
    #allocation5 [shape = 'u8[8192]{0}', space=vmem, size = 0x2000, scoped, tag = 'output window, operand 0, single buffered']
    %6 = vsyncpa [#allocation3], 0
    %7 = vsyncpa [#allocation4], 0
    // Predicated region
    $region2: #{tpu_custom_call.1} parent=1 // pred_check
      _
    $region3: #{tpu_custom_call.1} parent=1 // pred_check_branch
      %9 = sbr.rel (0) target = $region5
    $region4: #{tpu_custom_call.1} parent=1 // pred_region
      %11 = vsyncadd [#allocation3], 0
      %s12 = sshll.u32 %s0, 4
      %s13 = int_to_ptr.hbm [resolvable:$true] %s12
      %s14 = sshll.u32 [#allocation2], 4
      %s15 = int_to_ptr.vmem [resolvable:$true] %s14
      %20 = dma.hbm_to_vmem [thread:$0]  %s13, 256, %s15, [#allocation3], 128, 128, 8
    $region5: #{tpu_custom_call.1} parent=1 // pred_fallthru
      _
    // Predicated region
    $region6: #{tpu_custom_call.1} parent=1 // pred_check
      _
    $region7: #{tpu_custom_call.1} parent=1 // pred_check_branch
      %22 = sbr.rel (0) target = $region9
    $region8: #{tpu_custom_call.1} parent=1 // pred_region
      %24 = dma.done [#allocation3], 256
    $region9: #{tpu_custom_call.1} parent=1 // pred_fallthru
      _
    %v25 = vld [vmem:[#allocation2] sm:$0xff]
    %v26 = vld [vmem:[#allocation2 + $0x8] sm:$0xff]
    %v27 = vmul.f32 %v25, %v25
    %v28 = vmul.f32 %v26, %v26
    %29 = vadd.xlane.f32.xlu0 %v27
    %v30 = vpop.xlane.xlu0 %29
    %31 = vadd.xlane.f32.xlu0 %v28
    %v32 = vpop.xlane.xlu0 %31
    %v33 = vmax.f32 %v30, 1e-24
    %v34 = vmax.f32 %v32, 1e-24
    %v35 = vrsqrt.pop %v33
    %v36 = vmul.f32 %v35, %v33
    %v37 = vmul.f32 %v36, %v35
    %v38 = vmul.f32 0.5, %v37
    %v39 = vsub.f32 1.5, %v38
    %v40 = vmul.f32 %v35, %v39
    %vm41 = vweird.f32 %v33
    %vm42 = vweird.f32 %v35
    %vm43 = vmor %vm41, %vm42
    %v44 = vsel %vm43, %v35, %v40
    %v45 = vrsqrt.pop %v34
    %v46 = vmul.f32 %v45, %v34
    %v47 = vmul.f32 %v46, %v45
    %v48 = vmul.f32 0.5, %v47
    %v49 = vsub.f32 1.5, %v48
    %v50 = vmul.f32 %v45, %v49
    %vm51 = vweird.f32 %v34
    %vm52 = vweird.f32 %v45
    %vm53 = vmor %vm51, %vm52
    %v54 = vsel %vm53, %v45, %v50
    %v55 = vmul.f32 %v25, %v44
    %v56 = vmul.f32 %v26, %v54
    %57 = vst [vmem:[#allocation5] sm:$0xff] %v55
    %58 = vst [vmem:[#allocation5 + $0x8] sm:$0xff] %v56
    // Predicated region
    $region10: #{tpu_custom_call.1} parent=1 // pred_check
      _
    $region11: #{tpu_custom_call.1} parent=1 // pred_check_branch
      %60 = sbr.rel (0) target = $region13
    $region12: #{tpu_custom_call.1} parent=1 // pred_region
      %62 = vsyncadd [#allocation4], 0
      %s63 = sshll.u32 [#allocation5], 4
      %s64 = int_to_ptr.vmem [resolvable:$true] %s63
      %s65 = sshll.u32 %s1, 4
      %s66 = int_to_ptr.hbm [resolvable:$true] %s65
      %71 = dma.vmem_to_hbm [thread:$0]  %s64, 256, %s66, [#allocation4], 128, 128, 8
    $region13: #{tpu_custom_call.1} parent=1 // pred_fallthru
      _
    // Predicated region
    $region14: #{tpu_custom_call.1} parent=1 // pred_check
      _
    $region15: #{tpu_custom_call.1} parent=1 // pred_check_branch
      %73 = sbr.rel (0) target = $region17
    $region16: #{tpu_custom_call.1} parent=1 // pred_region
      %75 = dma.done [#allocation4], 256
    $region17: #{tpu_custom_call.1} parent=1 // pred_fallthru
      _
    %76 = vsyncpa [#allocation3], 1
    %77 = vsyncpa [#allocation4], 1

</llo_original>
